<compile_context>
chip_gen: v7x
topology: tpu7x:2x2x1
jax: 0.10.0
libtpu: 0.0.40
codegen_flags: <defaults>
</compile_context>

<pallas_src>
import math
from functools import partial

import jax
import jax.numpy as jnp
from jax.experimental import pallas as pl
from jax.experimental.pallas import tpu as pltpu

# ---- constants mirroring the PyTorch Config / TimeWeightedMSE.__init__ ----
FORECAST_STEPS = 3 * 24 * 6      # 432
DT = 600.0
EPS = 1e-05

TILE_B_MAX = 1024                # rows of pred/target per grid step


def make_time_weights(steps: int = FORECAST_STEPS,
                      dt: float = DT,
                      eps: float = EPS) -> jnp.ndarray:
    """Deterministic buffer `w` from TimeWeightedMSE.__init__ (shape (steps,))."""
    gamma = -math.log(eps) / (steps * dt)
    t = jnp.arange(steps, dtype=jnp.float32) * dt
    return jnp.exp(-gamma * t)


# ------------------------------- Pallas kernel ------------------------------
def _twmse_kernel(pred_ref, target_ref, w_ref, out_ref, *,
                  batch: int, tile_b: int, mask_tail: bool):
    # (tile_b, T) squared error -> batch (sublane) reduction -> one weighted
    # row per tile.  w_ref already carries 1/(B*T), so the wrapper only has to
    # sum the partial rows.
    diff = pred_ref[...] - target_ref[...]                   # (tile_b, T) f32
    sq = diff * diff
    if mask_tail:
        # Last batch block overhangs the array: zero rows >= batch so garbage
        # in the out-of-bounds VMEM region contributes nothing.
        row0 = pl.program_id(0) * tile_b
        rows = row0 + jax.lax.broadcasted_iota(jnp.int32, sq.shape, 0)
        sq = jnp.where(rows < batch, sq, 0.0)
    col_sq = jnp.sum(sq, axis=0, keepdims=True)              # (1, T)
    out_ref[...] = (col_sq * w_ref[...]).reshape(out_ref.shape)


def time_weighted_mse(pred: jnp.ndarray,
                      target: jnp.ndarray,
                      w: jnp.ndarray) -> jnp.ndarray:
    """Scalar mean((pred - target)**2 * w) — matches TimeWeightedMSE.forward."""
    B, T = pred.shape
    assert target.shape == (B, T)
    assert w.shape == (T,)

    # Batch tiling: tile_b == B (full-extent block) for small batches,
    # otherwise 1024-row tiles with an in-kernel mask on the tail block.
    tile_b = B if B <= TILE_B_MAX else TILE_B_MAX
    num_tiles = pl.cdiv(B, tile_b)
    mask_tail = (B % tile_b) != 0

    # Fold the global 1/(B*T) mean into w (tiny 432-element wrapper op).
    w_scaled = (w.astype(jnp.float32) / jnp.float32(B * T)).reshape(1, T)

    kernel = partial(_twmse_kernel, batch=B, tile_b=tile_b, mask_tail=mask_tail)

    partial_rows = pl.pallas_call(
        kernel,
        out_shape=jax.ShapeDtypeStruct((num_tiles, 1, T), jnp.float32),
        grid=(num_tiles,),
        in_specs=[
            pl.BlockSpec((tile_b, T), lambda i: (i, 0)),     # pred rows
            pl.BlockSpec((tile_b, T), lambda i: (i, 0)),     # target rows
            pl.BlockSpec((1, T), lambda i: (0, 0)),          # resident weights
        ],
        out_specs=pl.BlockSpec((1, 1, T), lambda i: (i, 0, 0)),
        compiler_params=pltpu.CompilerParams(
            dimension_semantics=("parallel",),               # both TCs on v7x
        ),
    )(pred, target, w_scaled)

    # Tiny (num_tiles, 1, 432) finish in XLA; masked rows contribute 0.
    # TODO(synk): at tiny problem sizes (e.g. the demo's 4x432) this loss is
    # pure launch overhead — fuse it into the graph producing `pred` instead.
    return jnp.sum(partial_rows)


# ---------------------------------- demo ------------------------------------
if __name__ == "__main__":
    key = jax.random.PRNGKey(0)
    k1, k2 = jax.random.split(key)

    B = 4                               # small batch
    T = FORECAST_STEPS                  # 432, as implied by the module

    pred = jax.random.normal(k1, (B, T), dtype=jnp.float32)
    target = jax.random.normal(k2, (B, T), dtype=jnp.float32)
    w = make_time_weights()             # (432,) decay buffer

    loss = time_weighted_mse(pred, target, w)
    jax.block_until_ready(loss)

    # sanity check against plain-JAX reference of the PyTorch forward
    ref = jnp.mean((pred - target) ** 2 * w)
    assert jnp.allclose(loss, ref, rtol=1e-5, atol=1e-6), (loss, ref)

    print("KERNEL_OK")
</pallas_src>

<mosaic_0001>
module attributes {stable_mosaic.version = 11 : i64} {
  func.func @_twmse_kernel(%arg0: i32, %arg1: memref<4x432xf32, #tpu.memory_space<vmem>>, %arg2: memref<4x432xf32, #tpu.memory_space<vmem>>, %arg3: memref<1x432xf32, #tpu.memory_space<vmem>>, %arg4: memref<1x1x432xf32, #tpu.memory_space<vmem>>) attributes {dimension_semantics = [#tpu.dimension_semantics<parallel>], iteration_bounds = array<i64: 1>, scalar_prefetch = 0 : i64, scratch_operands = 0 : i64, tpu.core_type = #tpu.core_type<tc>, window_params = [{transform_indices = @transform_0, window_bounds = array<i64: 4, 432>}, {transform_indices = @transform_1, window_bounds = array<i64: 4, 432>}, {pipeline_mode = #tpu.pipeline_mode<synchronous>, transform_indices = @transform_2, window_bounds = array<i64: 1, 432>}, {transform_indices = @transform_3, window_bounds = array<i64: 1, 1, 432>}]} {
    %c0 = arith.constant 0 : index
    %c0_0 = arith.constant 0 : index
    %0 = vector.load %arg1[%c0, %c0_0] : memref<4x432xf32, #tpu.memory_space<vmem>>, vector<4x432xf32>
    %c0_1 = arith.constant 0 : index
    %c0_2 = arith.constant 0 : index
    %1 = vector.load %arg2[%c0_1, %c0_2] : memref<4x432xf32, #tpu.memory_space<vmem>>, vector<4x432xf32>
    %2 = arith.subf %0, %1 : vector<4x432xf32>
    %3 = arith.mulf %2, %2 : vector<4x432xf32>
    %cst = arith.constant dense<0.000000e+00> : vector<432xf32>
    %4 = vector.multi_reduction <add>, %3, %cst [0] : vector<4x432xf32> to vector<432xf32>
    %5 = vector.shape_cast %4 : vector<432xf32> to vector<1x432xf32>
    %c0_3 = arith.constant 0 : index
    %c0_4 = arith.constant 0 : index
    %6 = vector.load %arg3[%c0_3, %c0_4] : memref<1x432xf32, #tpu.memory_space<vmem>>, vector<1x432xf32>
    %7 = arith.mulf %5, %6 : vector<1x432xf32>
    %8 = vector.shape_cast %7 : vector<1x432xf32> to vector<1x1x432xf32>
    %c0_5 = arith.constant 0 : index
    %c0_6 = arith.constant 0 : index
    %c0_7 = arith.constant 0 : index
    %9 = vector.load %arg4[%c0_5, %c0_6, %c0_7] : memref<1x1x432xf32, #tpu.memory_space<vmem>>, vector<1x1x432xf32>
    tpu.vector_store %arg4[%c0_5, %c0_6, %c0_7], %8 {strides = array<i32>} : memref<1x1x432xf32, #tpu.memory_space<vmem>>, vector<1x1x432xf32>,
    return
  }
  func.func @transform_0(%arg0: i32) -> (i32, i32) {
    %c0_i32 = arith.constant 0 : i32
    %c0_i32_0 = arith.constant 0 : i32
    return %arg0, %c0_i32 : i32, i32
  }
  func.func @transform_1(%arg0: i32) -> (i32, i32) {
    %c0_i32 = arith.constant 0 : i32
    %c0_i32_0 = arith.constant 0 : i32
    return %arg0, %c0_i32 : i32, i32
  }
  func.func @transform_2(%arg0: i32) -> (i32, i32) {
    %c0_i32 = arith.constant 0 : i32
    %c0_i32_0 = arith.constant 0 : i32
    %c0_i32_1 = arith.constant 0 : i32
    return %c0_i32, %c0_i32_0 : i32, i32
  }
  func.func @transform_3(%arg0: i32) -> (i32, i32, i32) {
    %c0_i32 = arith.constant 0 : i32
    %c0_i32_0 = arith.constant 0 : i32
    %c0_i32_1 = arith.constant 0 : i32
    return %arg0, %c0_i32, %c0_i32_0 : i32, i32, i32
  }
}

</mosaic_0001>

<llo_original>
// kernel: tpu_custom_call.1
$region0: #{tpu_custom_call.1}
  #allocation0 [shape = 'u32[]', space=smem, size = 0x4, offset = 0x4, fixed_abs, tag = 'smem constant byte address 0x4 - core index']
  #allocation1 [shape = 'u32[144,128]{1,0:T(1,128)}', space=vmem, size = 0x12000, scoped, tag = 'internal scratch']
  %s0 = inlined_call_operand.hbm [shape: f32[4,432], index: 0, kind: input, shape index: {}]
  %s1 = inlined_call_operand.hbm [shape: f32[4,432], index: 1, kind: input, shape index: {}]
  %s2 = inlined_call_operand.vmem [shape: f32[1,432], index: 2, kind: input, shape index: {}]
  %s3 = inlined_call_operand.hbm [shape: f32[1,1,432], index: 3, kind: output, shape index: {}]
  %s4 = sld [smem:[#allocation0]]
  $region30: #{tpu_custom_call.1} parent=0
    _
  %s6 = ssub.s32 1, %s4
  %s7 = scalar_select 0, %s6, %s4
  $region1: #{tpu_custom_call.1} parent=0
    #allocation2 [shape = 'u8[8192]{0}', space=vmem, size = 0x2000, scoped, tag = 'input window, operand 0, single buffered']
    #allocation3 [shape = 's32[1]{0}', space=sflag, size = 0x4, scoped, tag = 'scoped memory for tpu_custom_call.1']
    #allocation4 [shape = 's32[1]{0}', space=sflag, size = 0x4, scoped, tag = 'scoped memory for tpu_custom_call.1']
    #allocation5 [shape = 'u8[8192]{0}', space=vmem, size = 0x2000, scoped, tag = 'input window, operand 1, single buffered']
    #allocation6 [shape = 's32[1]{0}', space=sflag, size = 0x4, scoped, tag = 'scoped memory for tpu_custom_call.1']
    #allocation7 [shape = 'u8[2048]{0}', space=vmem, size = 0x800, scoped, tag = 'output window, operand 0, single buffered']
    %8 = vsyncpa [#allocation3], 0
    %9 = vsyncpa [#allocation6], 0
    %10 = vsyncpa [#allocation4], 0
    // Predicated region
    $region2: #{tpu_custom_call.1} parent=1 // pred_check
      _
    $region3: #{tpu_custom_call.1} parent=1 // pred_check_branch
      %12 = sbr.rel (0) target = $region5
    $region4: #{tpu_custom_call.1} parent=1 // pred_region
      %s14 = ssub.s32 256, 256
      %15 = vsyncadd [#allocation3], %s14
      %s17 = sshll.u32 [#allocation2], 4
      %s18 = int_to_ptr.vmem [resolvable:$true] %s17
      %20 = dma.hbm_to_vmem [thread:$0]  %s0, 256, %s18, [#allocation3]
    $region5: #{tpu_custom_call.1} parent=1 // pred_fallthru
      _
    // Predicated region
    $region6: #{tpu_custom_call.1} parent=1 // pred_check
      _
    $region7: #{tpu_custom_call.1} parent=1 // pred_check_branch
      %22 = sbr.rel (0) target = $region9
    $region8: #{tpu_custom_call.1} parent=1 // pred_region
      %s24 = ssub.s32 256, 256
      %25 = vsyncadd [#allocation6], %s24
      %s27 = sshll.u32 [#allocation5], 4
      %s28 = int_to_ptr.vmem [resolvable:$true] %s27
      %30 = dma.hbm_to_vmem [thread:$0]  %s1, 256, %s28, [#allocation6]
    $region9: #{tpu_custom_call.1} parent=1 // pred_fallthru
      _
    // Predicated region
    $region10: #{tpu_custom_call.1} parent=1 // pred_check
      _
    $region11: #{tpu_custom_call.1} parent=1 // pred_check_branch
      %32 = sbr.rel (0) target = $region13
    $region12: #{tpu_custom_call.1} parent=1 // pred_region
      _
    $region13: #{tpu_custom_call.1} parent=1 // pred_fallthru
      _
    // Predicated region
    $region14: #{tpu_custom_call.1} parent=1 // pred_check
      _
    $region15: #{tpu_custom_call.1} parent=1 // pred_check_branch
      %34 = sbr.rel (0) target = $region17
    $region16: #{tpu_custom_call.1} parent=1 // pred_region
      %35 = dma.done [#allocation3], 256
    $region17: #{tpu_custom_call.1} parent=1 // pred_fallthru
      _
    // Predicated region
    $region18: #{tpu_custom_call.1} parent=1 // pred_check
      _
    $region19: #{tpu_custom_call.1} parent=1 // pred_check_branch
      %37 = sbr.rel (0) target = $region21
    $region20: #{tpu_custom_call.1} parent=1 // pred_region
      %38 = dma.done [#allocation6], 256
    $region21: #{tpu_custom_call.1} parent=1 // pred_fallthru
      _
    %v39 = vld [vmem:[#allocation2] sm:$0xff]
    %v40 = vld [vmem:[#allocation2 + $0x8] sm:$0xff]
    %v41 = vld [vmem:[#allocation5] sm:$0xff]
    %v42 = vld [vmem:[#allocation5 + $0x8] sm:$0xff]
    %v43 = vsub.f32 %v39, %v41
    %v44 = vsub.f32 %v40, %v42
    %v45 = vmul.f32 %v43, %v43
    %v46 = vmul.f32 %v44, %v44
    %v49 = vcombine.high %v45, %v45
    %v50 = vcombine.high %v46, %v46
    %vm53 = vcmask 1043456
    %v54 = vsel %vm53, %v45, 0.0
    %v55 = vrot.slane %v54, 4
    %v56 = vadd.f32 %v54, %v55
    %v57 = vrot.slane %v56, 2
    %v58 = vadd.f32 %v56, %v57
    %v59 = vrot.slane %v58, 1
    %v60 = vadd.f32 %v58, %v59
    %v61 = vsel %vm53, %v49, 0.0
    %v62 = vrot.slane %v61, 4
    %v63 = vadd.f32 %v61, %v62
    %v64 = vrot.slane %v63, 2
    %v65 = vadd.f32 %v63, %v64
    %v66 = vrot.slane %v65, 1
    %v67 = vadd.f32 %v65, %v66
    %v68 = vsel %vm53, %v46, 0.0
    %v69 = vrot.slane %v68, 4
    %v70 = vadd.f32 %v68, %v69
    %v71 = vrot.slane %v70, 2
    %v72 = vadd.f32 %v70, %v71
    %v73 = vrot.slane %v72, 1
    %v74 = vadd.f32 %v72, %v73
    %vm75 = vcmask 388096
    %v76 = vsel %vm75, %v50, 0.0
    %v77 = vrot.slane %v76, 4
    %v78 = vadd.f32 %v76, %v77
    %v79 = vrot.slane %v78, 2
    %v80 = vadd.f32 %v78, %v79
    %v81 = vrot.slane %v80, 1
    %v82 = vadd.f32 %v80, %v81
    %v83 = vld [vmem:[%s2] sm:$0xf]
    %v85 = vlaneseq
    %v86 = vshrl.u32 %v85, 7
    %v87 = vsub.s32 0, %v86
    %v88 = vrot.slane %v83, %v87
    %v89 = vlaneseq
    %v90 = vshrl.u32 %v89, 7
    %v91 = vsub.s32 1, %v90
    %v92 = vrot.slane %v83, %v91
    %v93 = vlaneseq
    %v94 = vshrl.u32 %v93, 7
    %v95 = vsub.s32 2, %v94
    %v96 = vrot.slane %v83, %v95
    %v97 = vlaneseq
    %v98 = vshrl.u32 %v97, 7
    %v99 = vsub.s32 3, %v98
    %v100 = vrot.slane %v83, %v99
    %v105 = vmul.f32 %v60, %v88
    %v106 = vmul.f32 %v67, %v92
    %v107 = vmul.f32 %v74, %v96
    %v108 = vmul.f32 %v82, %v100
    %v113 = vcombine.low %v105, %v106
    %v114 = vcombine.low %v107, %v108
    %v116 = vunpack.c.l.s4 1966171168
    %v117 = vunpack.c.0.s8 %v116
    %v118 = vlaneseq
    %v119 = vshrl.u32 %v118, 7
    %v120 = vsub.s32 %v117, %v119
    %v121 = vrot.slane %v113, %v120
    %v123 = vunpack.c.l.s4 1966171168
    %v124 = vunpack.c.0.s8 %v123
    %v125 = vlaneseq
    %v126 = vshrl.u32 %v125, 7
    %v127 = vsub.s32 %v124, %v126
    %v128 = vrot.slane %v114, %v127
    %v129 = vcombine.low %v121, %v128
    %v131 = vunpack.c.l.s4 1966171168
    %v132 = vunpack.c.0.s8 %v131
    %v133 = vlaneseq
    %v134 = vshrl.u32 %v133, 7
    %v135 = vsub.s32 %v132, %v134
    %v136 = vrot.slane %v129, %v135
    %v138 = vlaneseq
    %vm139 = vcmp.ge.s32.totalorder %v138, 0
    %vm140 = vcmp.lt.s32.totalorder %v138, 432
    %vm141 = vmand %vm139, %vm140
    %142 = vst.msk [vmem:[#allocation7] sm:$0xf] %vm141, %v136
    // Predicated region
    $region22: #{tpu_custom_call.1} parent=1 // pred_check
      _
    $region23: #{tpu_custom_call.1} parent=1 // pred_check_branch
      %144 = sbr.rel (0) target = $region25
    $region24: #{tpu_custom_call.1} parent=1 // pred_region
      %s146 = ssub.s32 64, 64
      %147 = vsyncadd [#allocation4], %s146
      %s149 = sshll.u32 [#allocation7], 4
      %s150 = int_to_ptr.vmem [resolvable:$true] %s149
      %152 = dma.vmem_to_hbm [thread:$0]  %s150, 64, %s3, [#allocation4]
    $region25: #{tpu_custom_call.1} parent=1 // pred_fallthru
      _
    // Predicated region
    $region26: #{tpu_custom_call.1} parent=1 // pred_check
      _
    $region27: #{tpu_custom_call.1} parent=1 // pred_check_branch
      %154 = sbr.rel (0) target = $region29
    $region28: #{tpu_custom_call.1} parent=1 // pred_region
      %155 = dma.done [#allocation4], 64
    $region29: #{tpu_custom_call.1} parent=1 // pred_fallthru
      _
    %156 = vsyncpa [#allocation3], 1
    %157 = vsyncpa [#allocation6], 1
    %158 = vsyncpa [#allocation4], 1

</llo_original>
